<compile_context>
chip_gen: v6e
topology: v6e:2x2x1
jax: 0.10.0
libtpu: 0.0.40
codegen_flags: <defaults>
</compile_context>

<pallas_src>
import jax
import jax.numpy as jnp
from jax.experimental import pallas as pl
from jax.experimental.pallas import tpu as pltpu


def _copy_kernel(x_ref, o_ref):
    # Elementwise identity copy of one (tc, tw) tile.
    o_ref[...] = x_ref[...]


def _pick_block_dims(C: int, W: int, itemsize: int):
    """Choose a (tc, tw) block satisfying the TPU (8, 128) tiling rule.

    Each of the last two block dims must be a multiple of the hardware
    granule (sublane granule = 32 // itemsize, lane granule = 128) OR equal
    the full array extent.  Tiles are capped at ~2 MiB so the double-buffered
    input+output working set (~4 tiles) stays well under the default scoped
    VMEM limit on v5e/v6e/v7x.
    """
    lane_granule = 128
    sub_granule = max(1, 32 // itemsize)   # 8 for f32, 16 for bf16, 32 for i8
    cap_bytes = 2 * 1024 * 1024            # <= 2 MiB per tile

    # Lane (last) dim: lane-dense multiple of 128 when possible, capped at
    # 2048 lanes (well past the roofline knee; keeps the row budget sane).
    if W < lane_granule:
        tw = W                              # full extent -> always legal
    else:
        tw = min((W // lane_granule) * lane_granule, 2048)

    # Sublane (second-minor) dim: multiple of the dtype granule, capped by the
    # per-tile byte budget and 512 rows.
    if C < sub_granule:
        tc = C                              # full extent -> always legal
    else:
        rows_cap = max(sub_granule, cap_bytes // max(1, tw * itemsize))
        tc = min(
            (C // sub_granule) * sub_granule,
            (rows_cap // sub_granule) * sub_granule,
            512,
        )
        tc = max(tc, sub_granule)
    return tc, tw


def _identity_copy_2d(x2d: jax.Array) -> jax.Array:
    """Tiled Pallas identity copy of a 2-D (C, W) array."""
    C, W = x2d.shape
    tc, tw = _pick_block_dims(C, W, jnp.dtype(x2d.dtype).itemsize)
    grid = (pl.cdiv(C, tc), pl.cdiv(W, tw))

    return pl.pallas_call(
        _copy_kernel,
        out_shape=jax.ShapeDtypeStruct((C, W), x2d.dtype),
        grid=grid,
        in_specs=[pl.BlockSpec((tc, tw), lambda i, j: (i, j))],
        out_specs=pl.BlockSpec((tc, tw), lambda i, j: (i, j)),
        compiler_params=pltpu.CompilerParams(
            # Both axes independent -> megacore/TC sharding where available.
            dimension_semantics=("parallel", "parallel"),
        ),
        # TODO(synk): with caller-side buffer donation, input_output_aliases={0: 0}
        # would drop the second HBM allocation for this semantically no-op copy;
        # without donation XLA would insert a defensive copy, so it is omitted.
    )(x2d)


def squeeze_module_forward(x: jax.Array) -> jax.Array:
    """Reproduces SqueezeModule.forward for an input of shape (1, C, 1, W).

    torch trace:
      (1,C,1,W) --squeeze((0,2))--> (C,W) --unsqueeze(0)--> (1,C,W)
      --unsqueeze(2)--> (1,C,1,W) --squeeze(2)--> (1,C,W) --squeeze(0)--> (C,W)
      --unsqueeze(0)--> (1,C,W) --unsqueeze(2)--> (1,C,1,W) --squeeze()-->
      drop all remaining size-1 dims.
    Net effect: drop every size-1 dim of the (1, C, 1, W) input.
    """
    assert x.ndim == 4 and x.shape[0] == 1 and x.shape[2] == 1, (
        "expected (1, C, 1, W) input so the squeezes match torch semantics"
    )
    # Shape bookkeeping (pure metadata) stays in plain JAX.
    x2d = jnp.squeeze(x, axis=(0, 2))  # (C, W)

    # Data path through the Pallas kernel (tiled identity copy).
    out2d = _identity_copy_2d(x2d)

    # Final torch `.squeeze()` also removes C / W if they happen to be 1.
    return jnp.squeeze(out2d)


if __name__ == "__main__":
    key = jax.random.PRNGKey(0)
    # Small shape consistent with the forward: dims 0 and 2 must be size 1.
    x = jax.random.normal(key, (1, 4, 1, 16), dtype=jnp.float32)

    y = squeeze_module_forward(x)
    y = jax.block_until_ready(y)

    # Reference: the net effect is dropping all size-1 dims.
    ref = jnp.squeeze(x)
    assert y.shape == (4, 16), y.shape
    assert y.dtype == x.dtype
    assert jnp.allclose(y, ref), "mismatch vs reference squeeze"

    print("KERNEL_OK")
</pallas_src>

<mosaic_0001>
module attributes {stable_mosaic.version = 11 : i64} {
  func.func @_copy_kernel(%arg0: i32, %arg1: i32, %arg2: memref<4x16xf32, #tpu.memory_space<vmem>>, %arg3: memref<4x16xf32, #tpu.memory_space<vmem>>) attributes {dimension_semantics = [#tpu.dimension_semantics<parallel>, #tpu.dimension_semantics<parallel>], iteration_bounds = array<i64: 1, 1>, scalar_prefetch = 0 : i64, scratch_operands = 0 : i64, tpu.core_type = #tpu.core_type<tc>, window_params = [{transform_indices = @transform_0, window_bounds = array<i64: 4, 16>}, {transform_indices = @transform_1, window_bounds = array<i64: 4, 16>}]} {
    %c0 = arith.constant 0 : index
    %c0_0 = arith.constant 0 : index
    %0 = vector.load %arg2[%c0, %c0_0] : memref<4x16xf32, #tpu.memory_space<vmem>>, vector<4x16xf32>
    %c0_1 = arith.constant 0 : index
    %c0_2 = arith.constant 0 : index
    %1 = vector.load %arg3[%c0_1, %c0_2] : memref<4x16xf32, #tpu.memory_space<vmem>>, vector<4x16xf32>
    tpu.vector_store %arg3[%c0_1, %c0_2], %0 {strides = array<i32>} : memref<4x16xf32, #tpu.memory_space<vmem>>, vector<4x16xf32>,
    return
  }
  func.func @transform_0(%arg0: i32, %arg1: i32) -> (i32, i32) {
    %c0_i32 = arith.constant 0 : i32
    return %arg0, %arg1 : i32, i32
  }
  func.func @transform_1(%arg0: i32, %arg1: i32) -> (i32, i32) {
    %c0_i32 = arith.constant 0 : i32
    return %arg0, %arg1 : i32, i32
  }
}

</mosaic_0001>

<llo_original>
// kernel: tpu_custom_call.1
$region0: #{tpu_custom_call.1}
  #allocation0 [shape = 'u32[]', space=smem, size = 0x4, offset = 0x4, fixed_abs, tag = 'smem constant byte address 0x4 - core index']
  #allocation1 [shape = 'u32[144,128]{1,0:T(1,128)}', space=vmem, size = 0x12000, scoped, tag = 'internal scratch']
  %s0 = inlined_call_operand.hbm [shape: f32[4,16], index: 0, kind: input, shape index: {}]
  %s1 = inlined_call_operand.hbm [shape: f32[4,16], index: 1, kind: output, shape index: {}]
  %s2 = sld [smem:[#allocation0]]
  $region18: #{tpu_custom_call.1} parent=0
    _
  %s4 = ssub.s32 1, %s2
  %s5 = scalar_select 0, %s4, %s2
  $region1: #{tpu_custom_call.1} parent=0
    #allocation2 [shape = 'u8[2048]{0}', space=vmem, size = 0x800, scoped, tag = 'input window, operand 0, single buffered']
    #allocation3 [shape = 's32[1]{0}', space=sflag, size = 0x4, scoped, tag = 'scoped memory for tpu_custom_call.1']
    #allocation4 [shape = 's32[1]{0}', space=sflag, size = 0x4, scoped, tag = 'scoped memory for tpu_custom_call.1']
    #allocation5 [shape = 'u8[2048]{0}', space=vmem, size = 0x800, scoped, tag = 'output window, operand 0, single buffered']
    %6 = vsyncpa [#allocation3], 0
    %7 = vsyncpa [#allocation4], 0
    // Predicated region
    $region2: #{tpu_custom_call.1} parent=1 // pred_check
      _
    $region3: #{tpu_custom_call.1} parent=1 // pred_check_branch
      %9 = sbr.rel (0) target = $region5
    $region4: #{tpu_custom_call.1} parent=1 // pred_region
      %s11 = ssub.s32 64, 64
      %12 = vsyncadd [#allocation3], %s11
      %s14 = sshll.u32 [#allocation2], 4
      %s15 = int_to_ptr.vmem [resolvable:$true] %s14
      %17 = dma.hbm_to_vmem [thread:$0]  %s0, 64, %s15, [#allocation3]
    $region5: #{tpu_custom_call.1} parent=1 // pred_fallthru
      _
    // Predicated region
    $region6: #{tpu_custom_call.1} parent=1 // pred_check
      _
    $region7: #{tpu_custom_call.1} parent=1 // pred_check_branch
      %19 = sbr.rel (0) target = $region9
    $region8: #{tpu_custom_call.1} parent=1 // pred_region
      %20 = dma.done [#allocation3], 64
    $region9: #{tpu_custom_call.1} parent=1 // pred_fallthru
      _
    %v21 = vld [vmem:[#allocation2] sm:$0xf]
    %vm22 = vcmask 125952
    %23 = vst.msk [vmem:[#allocation5] sm:$0xf] %vm22, %v21
    // Predicated region
    $region10: #{tpu_custom_call.1} parent=1 // pred_check
      _
    $region11: #{tpu_custom_call.1} parent=1 // pred_check_branch
      %25 = sbr.rel (0) target = $region13
    $region12: #{tpu_custom_call.1} parent=1 // pred_region
      %s27 = ssub.s32 64, 64
      %28 = vsyncadd [#allocation4], %s27
      %s30 = sshll.u32 [#allocation5], 4
      %s31 = int_to_ptr.vmem [resolvable:$true] %s30
      %33 = dma.vmem_to_hbm [thread:$0]  %s31, 64, %s1, [#allocation4]
    $region13: #{tpu_custom_call.1} parent=1 // pred_fallthru
      _
    // Predicated region
    $region14: #{tpu_custom_call.1} parent=1 // pred_check
      _
    $region15: #{tpu_custom_call.1} parent=1 // pred_check_branch
      %35 = sbr.rel (0) target = $region17
    $region16: #{tpu_custom_call.1} parent=1 // pred_region
      %36 = dma.done [#allocation4], 64
    $region17: #{tpu_custom_call.1} parent=1 // pred_fallthru
      _
    %37 = vsyncpa [#allocation3], 1
    %38 = vsyncpa [#allocation4], 1

</llo_original>
